<compile_context>
chip_gen: v7x
topology: tpu7x:2x2x1
jax: 0.10.0
libtpu: 0.0.40
codegen_flags: <defaults>
</compile_context>

<pallas_src>
import jax
import jax.numpy as jnp
from jax import lax
from jax.experimental import pallas as pl
from jax.experimental.pallas import tpu as pltpu

VOCAB = 128      # shared synthetic vocabulary size
HIDDEN = 32      # embedding / hidden width
N_WORDS = 8      # whitespace-split words per "sentence" (one token per word)
TOPK = 10        # torch code decodes output_ids[i + 1, :10]

PAD_ID = 0
BOS_ID = 1       # documentation only — BOS rows no longer enter the kernel
MASK_ID = 2
THRESH = 0.1

AUG_H = HIDDEN + 1          # [lm_emb row | 1.0]   (LM bias folded into head)
TAB_W = AUG_H + 1           # [lm_emb | 1.0 | det_score]
_INT32_MIN = -(2 ** 31)


# ---------------------------------------------------------------------------
# Fused Pallas kernel: gather(+detector score) -> hard mask -> LM head -> top-10
# ---------------------------------------------------------------------------
def _fused_kernel(ids_ref,    # (rows, 1)       int32  word token ids
                  tab_ref,    # (VOCAB, TAB_W)  f32    [lm_emb | 1 | det_score]
                  mrow_ref,   # (1, AUG_H)      f32    [lm_emb[MASK_ID] | 1]
                  head_ref,   # (AUG_H, VOCAB)  f32    [w_lm ; b_lm]
                  out_ref):   # (rows, VOCAB)   int32  lane-dense result slab
    rows = ids_ref.shape[0]
    ids = ids_ref[...]                                           # (rows, 1)
    vocab_col = lax.broadcasted_iota(jnp.int32, (rows, VOCAB), 1)

    # --- single fused one-hot gather (one MXU push): LM embedding, folded
    #     bias column and precomputed detector score all at once --------------
    onehot = (ids == vocab_col).astype(jnp.float32)              # (rows, VOCAB)
    g = jnp.dot(onehot, tab_ref[...],
                preferred_element_type=jnp.float32)              # (rows, TAB_W)

    score = g[:, AUG_H:AUG_H + 1]                                # (rows, 1)
    flag = (score > 0.0).astype(jnp.int32)                       # (rows, 1)

    # --- hard masking: flagged rows use the <mask> embedding (bias col stays 1)
    lm_x = jnp.where(flag == 1, mrow_ref[...], g[:, :AUG_H])     # (rows, AUG_H)

    # --- MaskedLM vocab head (bias folded into last row of head) ------------
    logits = jnp.dot(lm_x, head_ref[...],
                     preferred_element_type=jnp.float32)         # (rows, VOCAB)

    # --- top-K: packed monotone key, ONE cross-lane max per step ------------
    bits = pltpu.bitcast(logits, jnp.int32)
    key = jnp.where(bits >= 0, bits, jnp.int32(_INT32_MIN) - bits)   # order-preserving
    # clear low 7 bits, pack reversed column index so equal buckets break
    # toward the smallest column index.
    packed = (key & jnp.int32(~(VOCAB - 1))) | (jnp.int32(VOCAB - 1) - vocab_col)

    out = jnp.zeros((rows, VOCAB), jnp.int32)
    for k in range(TOPK):
        pk = jnp.max(packed, axis=-1, keepdims=True)             # (rows, 1) lane max
        nxt = jnp.where(packed == pk, jnp.int32(_INT32_MIN), packed)  # clear winner (on-chain)
        # index extraction + column write are off the serial max chain
        idx = jnp.int32(VOCAB - 1) - (pk & jnp.int32(VOCAB - 1))
        out = jnp.where(vocab_col == k, idx, out)
        packed = nxt

    # zero predictions for unflagged rows; stash flag in column TOPK
    out = jnp.where(flag > 0, out, 0)
    out = jnp.where(vocab_col == TOPK, flag, out)
    out_ref[...] = out                                           # lane-dense store


def _build_call(num_steps, rows_per_step):
    total_rows = num_steps * rows_per_step
    return pl.pallas_call(
        _fused_kernel,
        grid=(num_steps,),
        out_shape=jax.ShapeDtypeStruct((total_rows, VOCAB), jnp.int32),
        in_specs=[
            pl.BlockSpec((rows_per_step, 1), lambda b: (b, 0)),   # ids stream
            pl.BlockSpec((VOCAB, TAB_W), lambda b: (0, 0)),       # table, resident
            pl.BlockSpec((1, AUG_H), lambda b: (0, 0)),           # mask row, resident
            pl.BlockSpec((AUG_H, VOCAB), lambda b: (0, 0)),       # LM head, resident
        ],
        out_specs=pl.BlockSpec((rows_per_step, VOCAB), lambda b: (b, 0)),
        compiler_params=pltpu.CompilerParams(
            dimension_semantics=("parallel",)),                   # batch axis -> 2 TCs on v7x
    )


# ---------------------------------------------------------------------------
# Parameter folding: detector head -> per-vocab score column, LM bias -> head
# ---------------------------------------------------------------------------
def _fold_params(params):
    det_score = (params["det_emb"] @ params["w_det"]
                 + params["b_det"].reshape(1, 1)
                 - jnp.float32(THRESH))                           # (VOCAB, 1)
    tab = jnp.concatenate(
        [params["lm_emb"], jnp.ones((VOCAB, 1), jnp.float32), det_score], axis=1)
    mrow = jnp.concatenate(
        [params["lm_emb"][MASK_ID:MASK_ID + 1, :], jnp.ones((1, 1), jnp.float32)],
        axis=1)                                                   # (1, AUG_H)
    head = jnp.concatenate([params["w_lm"], params["b_lm"]], axis=0)  # (AUG_H, VOCAB)
    return tab, mrow, head


# ---------------------------------------------------------------------------
# HardMasked.forward (numeric core)
# ---------------------------------------------------------------------------
def hard_masked_forward_batched(word_ids_batch, params, *, sents_per_step=None):
    """word_ids_batch: (B, N_WORDS) int32 — one tokenized sentence per row."""
    # TODO(synk): tokenizer string handling (subword pieces, the '<del-mask>'
    # token-deletion branch, re.sub / decode) has no Pallas equivalent; we use
    # exactly one token per whitespace word, so every flagged word -> <mask>.
    B = word_ids_batch.shape[0]
    if sents_per_step is None:
        sents_per_step = min(B, 16)            # 16 sentences -> 128 gather rows/step
    num_steps = -(-B // sents_per_step)
    padded_B = num_steps * sents_per_step

    ids = word_ids_batch.astype(jnp.int32)
    if padded_B != B:
        ids = jnp.concatenate(
            [ids, jnp.full((padded_B - B, N_WORDS), PAD_ID, jnp.int32)], axis=0)
    ids = ids.reshape(padded_B * N_WORDS, 1)

    tab, mrow, head = _fold_params(params)
    rows_per_step = sents_per_step * N_WORDS   # multiple of 8 -> sublane aligned
    slab = _build_call(num_steps, rows_per_step)(ids, tab, mrow, head)
    slab = slab.reshape(padded_B, N_WORDS, VOCAB)[:B]

    word_is_masked = slab[..., TOPK]           # (B, N_WORDS) int32 0/1 (torch returns ints)
    word_preds = slab[..., :TOPK]              # (B, N_WORDS, TOPK), zeroed if unflagged
    return word_ids_batch, word_is_masked, word_preds


def hard_masked_forward(word_ids, params):
    """Single-sentence forward, mirroring HardMasked.forward on one string."""
    _, flags, preds = hard_masked_forward_batched(
        word_ids.reshape(1, N_WORDS), params, sents_per_step=1)
    return word_ids, flags[0], preds[0]


# ---------------------------------------------------------------------------
def make_params(key):
    k = jax.random.split(key, 6)
    return {
        "det_emb": jax.random.normal(k[0], (VOCAB, HIDDEN), jnp.float32) * 0.5,
        "w_det":   jax.random.normal(k[1], (HIDDEN, 1), jnp.float32) * 0.3,
        "b_det":   jnp.zeros((1, 1), jnp.float32),
        "lm_emb":  jax.random.normal(k[2], (VOCAB, HIDDEN), jnp.float32) * 0.5,
        "w_lm":    jax.random.normal(k[3], (HIDDEN, VOCAB), jnp.float32) * 0.3,
        "b_lm":    jax.random.normal(k[4], (1, VOCAB), jnp.float32) * 0.1,
    }


if __name__ == "__main__":
    key = jax.random.PRNGKey(0)
    pkey, wkey, bkey = jax.random.split(key, 3)
    params = make_params(pkey)

    # --- single sentence (as in HardMasked.forward): 8 word ids, avoid specials
    word_ids = jax.random.randint(wkey, (N_WORDS,), 3, VOCAB, jnp.int32)
    fwd = jax.jit(hard_masked_forward)
    words, flags, preds = jax.block_until_ready(fwd(word_ids, params))
    assert words.shape == (N_WORDS,)
    assert flags.shape == (N_WORDS,)
    assert preds.shape == (N_WORDS, TOPK)
    assert bool(jnp.all((flags == 0) | (flags == 1)))
    assert bool(jnp.all((preds >= 0) & (preds < VOCAB)))
    assert bool(jnp.all(jnp.where(flags[:, None] == 0, preds == 0, True)))

    # --- small batched demo: grid over sentence groups, weights resident -----
    batch_ids = jax.random.randint(bkey, (4, N_WORDS), 3, VOCAB, jnp.int32)
    bfwd = jax.jit(lambda w, p: hard_masked_forward_batched(w, p, sents_per_step=2))
    _, bflags, bpreds = jax.block_until_ready(bfwd(batch_ids, params))
    assert bflags.shape == (4, N_WORDS)
    assert bpreds.shape == (4, N_WORDS, TOPK)

    print("KERNEL_OK")
</pallas_src>

<mosaic_0001>
module attributes {stable_mosaic.version = 11 : i64} {
  func.func @_fused_kernel(%arg0: i32, %arg1: memref<8x1xi32, #tpu.memory_space<vmem>>, %arg2: memref<128x34xf32, #tpu.memory_space<vmem>>, %arg3: memref<1x33xf32, #tpu.memory_space<vmem>>, %arg4: memref<33x128xf32, #tpu.memory_space<vmem>>, %arg5: memref<8x128xi32, #tpu.memory_space<vmem>>) attributes {dimension_semantics = [#tpu.dimension_semantics<parallel>], iteration_bounds = array<i64: 1>, scalar_prefetch = 0 : i64, scratch_operands = 0 : i64, tpu.core_type = #tpu.core_type<tc>, window_params = [{transform_indices = @transform_0, window_bounds = array<i64: 8, 1>}, {pipeline_mode = #tpu.pipeline_mode<synchronous>, transform_indices = @transform_1, window_bounds = array<i64: 128, 34>}, {pipeline_mode = #tpu.pipeline_mode<synchronous>, transform_indices = @transform_2, window_bounds = array<i64: 1, 33>}, {pipeline_mode = #tpu.pipeline_mode<synchronous>, transform_indices = @transform_3, window_bounds = array<i64: 33, 128>}, {transform_indices = @transform_4, window_bounds = array<i64: 8, 128>}]} {
    %c0 = arith.constant 0 : index
    %c0_0 = arith.constant 0 : index
    %0 = vector.load %arg1[%c0, %c0_0] : memref<8x1xi32, #tpu.memory_space<vmem>>, vector<8x1xi32>
    %1 = tpu.iota {dimensions = array<i32: 1>} : vector<8x128xi32>
    %2 = vector.broadcast %0 : vector<8x1xi32> to vector<8x128xi32>
    %3 = arith.cmpi eq, %2, %1 : vector<8x128xi32>
    %4 = arith.extui %3 : vector<8x128xi1> to vector<8x128xi32>
    %5 = arith.sitofp %4 : vector<8x128xi32> to vector<8x128xf32>
    %c0_1 = arith.constant 0 : index
    %c0_2 = arith.constant 0 : index
    %6 = vector.load %arg2[%c0_1, %c0_2] : memref<128x34xf32, #tpu.memory_space<vmem>>, vector<128x34xf32>
    %cst = arith.constant dense<0.000000e+00> : vector<8x34xf32>
    %7 = tpu.matmul %5, %6, %cst {dimension_numbers = #tpu.dot_dimension_numbers<[1], [0], [0], [1], [0, 0, 1, 1], [], []>} : vector<8x128xf32>, vector<128x34xf32>, vector<8x34xf32> -> vector<8x34xf32>
    %8 = vector.extract_strided_slice %7 {offsets = [0, 33], sizes = [8, 1], strides = [1, 1]} : vector<8x34xf32> to vector<8x1xf32>
    %cst_3 = arith.constant 0.000000e+00 : f32
    %9 = vector.broadcast %cst_3 : f32 to vector<8x1xf32>
    %10 = arith.cmpf ogt, %8, %9 : vector<8x1xf32>
    %11 = arith.extui %10 : vector<8x1xi1> to vector<8x1xi32>
    %c1_i32 = arith.constant 1 : i32
    %12 = vector.broadcast %c1_i32 : i32 to vector<8x1xi32>
    %13 = arith.cmpi eq, %11, %12 : vector<8x1xi32>
    %c0_4 = arith.constant 0 : index
    %c0_5 = arith.constant 0 : index
    %14 = vector.load %arg3[%c0_4, %c0_5] : memref<1x33xf32, #tpu.memory_space<vmem>>, vector<1x33xf32>
    %15 = vector.extract_strided_slice %7 {offsets = [0, 0], sizes = [8, 33], strides = [1, 1]} : vector<8x34xf32> to vector<8x33xf32>
    %16 = vector.shape_cast %13 : vector<8x1xi1> to vector<8x1xi1>
    %17 = vector.broadcast %16 : vector<8x1xi1> to vector<8x33xi1>
    %18 = vector.shape_cast %14 : vector<1x33xf32> to vector<1x33xf32>
    %19 = vector.broadcast %18 : vector<1x33xf32> to vector<8x33xf32>
    %20 = arith.select %17, %19, %15 : vector<8x33xi1>, vector<8x33xf32>
    %c0_6 = arith.constant 0 : index
    %c0_7 = arith.constant 0 : index
    %21 = vector.load %arg4[%c0_6, %c0_7] : memref<33x128xf32, #tpu.memory_space<vmem>>, vector<33x128xf32>
    %cst_8 = arith.constant dense<0.000000e+00> : vector<8x128xf32>
    %22 = tpu.matmul %20, %21, %cst_8 {dimension_numbers = #tpu.dot_dimension_numbers<[1], [0], [0], [1], [0, 0, 1, 1], [], []>} : vector<8x33xf32>, vector<33x128xf32>, vector<8x128xf32> -> vector<8x128xf32>
    %23 = tpu.bitcast %22 : vector<8x128xf32> -> vector<8x128xi32>
    %c0_i32 = arith.constant 0 : i32
    %24 = vector.broadcast %c0_i32 : i32 to vector<8x128xi32>
    %25 = arith.cmpi sge, %23, %24 : vector<8x128xi32>
    %c-2147483648_i32 = arith.constant -2147483648 : i32
    %26 = vector.broadcast %c-2147483648_i32 : i32 to vector<8x128xi32>
    %27 = arith.subi %26, %23 : vector<8x128xi32>
    %28 = arith.select %25, %23, %27 : vector<8x128xi1>, vector<8x128xi32>
    %c-128_i32 = arith.constant -128 : i32
    %29 = vector.broadcast %c-128_i32 : i32 to vector<8x128xi32>
    %30 = arith.andi %28, %29 : vector<8x128xi32>
    %c127_i32 = arith.constant 127 : i32
    %31 = vector.broadcast %c127_i32 : i32 to vector<8x128xi32>
    %32 = arith.subi %31, %1 : vector<8x128xi32>
    %33 = arith.ori %30, %32 : vector<8x128xi32>
    %c0_i32_9 = arith.constant 0 : i32
    %34 = vector.broadcast %c0_i32_9 : i32 to vector<8x128xi32>
    %cst_10 = arith.constant dense<-2147483648> : vector<8xi32>
    %35 = vector.multi_reduction <maxsi>, %33, %cst_10 [1] : vector<8x128xi32> to vector<8xi32>
    %36 = vector.shape_cast %35 : vector<8xi32> to vector<8x1xi32>
    %37 = vector.broadcast %36 : vector<8x1xi32> to vector<8x128xi32>
    %38 = arith.cmpi eq, %33, %37 : vector<8x128xi32>
    %c-2147483648_i32_11 = arith.constant -2147483648 : i32
    %39 = vector.broadcast %c-2147483648_i32_11 : i32 to vector<8x128xi32>
    %40 = arith.select %38, %39, %33 : vector<8x128xi1>, vector<8x128xi32>
    %c127_i32_12 = arith.constant 127 : i32
    %41 = vector.broadcast %c127_i32_12 : i32 to vector<8x1xi32>
    %42 = arith.andi %36, %41 : vector<8x1xi32>
    %c127_i32_13 = arith.constant 127 : i32
    %43 = vector.broadcast %c127_i32_13 : i32 to vector<8x1xi32>
    %44 = arith.subi %43, %42 : vector<8x1xi32>
    %c0_i32_14 = arith.constant 0 : i32
    %45 = vector.broadcast %c0_i32_14 : i32 to vector<8x128xi32>
    %46 = arith.cmpi eq, %1, %45 : vector<8x128xi32>
    %47 = vector.shape_cast %44 : vector<8x1xi32> to vector<8x1xi32>
    %48 = vector.broadcast %47 : vector<8x1xi32> to vector<8x128xi32>
    %49 = arith.select %46, %48, %34 : vector<8x128xi1>, vector<8x128xi32>
    %cst_15 = arith.constant dense<-2147483648> : vector<8xi32>
    %50 = vector.multi_reduction <maxsi>, %40, %cst_15 [1] : vector<8x128xi32> to vector<8xi32>
    %51 = vector.shape_cast %50 : vector<8xi32> to vector<8x1xi32>
    %52 = vector.broadcast %51 : vector<8x1xi32> to vector<8x128xi32>
    %53 = arith.cmpi eq, %40, %52 : vector<8x128xi32>
    %c-2147483648_i32_16 = arith.constant -2147483648 : i32
    %54 = vector.broadcast %c-2147483648_i32_16 : i32 to vector<8x128xi32>
    %55 = arith.select %53, %54, %40 : vector<8x128xi1>, vector<8x128xi32>
    %c127_i32_17 = arith.constant 127 : i32
    %56 = vector.broadcast %c127_i32_17 : i32 to vector<8x1xi32>
    %57 = arith.andi %51, %56 : vector<8x1xi32>
    %c127_i32_18 = arith.constant 127 : i32
    %58 = vector.broadcast %c127_i32_18 : i32 to vector<8x1xi32>
    %59 = arith.subi %58, %57 : vector<8x1xi32>
    %c1_i32_19 = arith.constant 1 : i32
    %60 = vector.broadcast %c1_i32_19 : i32 to vector<8x128xi32>
    %61 = arith.cmpi eq, %1, %60 : vector<8x128xi32>
    %62 = vector.shape_cast %59 : vector<8x1xi32> to vector<8x1xi32>
    %63 = vector.broadcast %62 : vector<8x1xi32> to vector<8x128xi32>
    %64 = arith.select %61, %63, %49 : vector<8x128xi1>, vector<8x128xi32>
    %cst_20 = arith.constant dense<-2147483648> : vector<8xi32>
    %65 = vector.multi_reduction <maxsi>, %55, %cst_20 [1] : vector<8x128xi32> to vector<8xi32>
    %66 = vector.shape_cast %65 : vector<8xi32> to vector<8x1xi32>
    %67 = vector.broadcast %66 : vector<8x1xi32> to vector<8x128xi32>
    %68 = arith.cmpi eq, %55, %67 : vector<8x128xi32>
    %c-2147483648_i32_21 = arith.constant -2147483648 : i32
    %69 = vector.broadcast %c-2147483648_i32_21 : i32 to vector<8x128xi32>
    %70 = arith.select %68, %69, %55 : vector<8x128xi1>, vector<8x128xi32>
    %c127_i32_22 = arith.constant 127 : i32
    %71 = vector.broadcast %c127_i32_22 : i32 to vector<8x1xi32>
    %72 = arith.andi %66, %71 : vector<8x1xi32>
    %c127_i32_23 = arith.constant 127 : i32
    %73 = vector.broadcast %c127_i32_23 : i32 to vector<8x1xi32>
    %74 = arith.subi %73, %72 : vector<8x1xi32>
    %c2_i32 = arith.constant 2 : i32
    %75 = vector.broadcast %c2_i32 : i32 to vector<8x128xi32>
    %76 = arith.cmpi eq, %1, %75 : vector<8x128xi32>
    %77 = vector.shape_cast %74 : vector<8x1xi32> to vector<8x1xi32>
    %78 = vector.broadcast %77 : vector<8x1xi32> to vector<8x128xi32>
    %79 = arith.select %76, %78, %64 : vector<8x128xi1>, vector<8x128xi32>
    %cst_24 = arith.constant dense<-2147483648> : vector<8xi32>
    %80 = vector.multi_reduction <maxsi>, %70, %cst_24 [1] : vector<8x128xi32> to vector<8xi32>
    %81 = vector.shape_cast %80 : vector<8xi32> to vector<8x1xi32>
    %82 = vector.broadcast %81 : vector<8x1xi32> to vector<8x128xi32>
    %83 = arith.cmpi eq, %70, %82 : vector<8x128xi32>
    %c-2147483648_i32_25 = arith.constant -2147483648 : i32
    %84 = vector.broadcast %c-2147483648_i32_25 : i32 to vector<8x128xi32>
    %85 = arith.select %83, %84, %70 : vector<8x128xi1>, vector<8x128xi32>
    %c127_i32_26 = arith.constant 127 : i32
    %86 = vector.broadcast %c127_i32_26 : i32 to vector<8x1xi32>
    %87 = arith.andi %81, %86 : vector<8x1xi32>
    %c127_i32_27 = arith.constant 127 : i32
    %88 = vector.broadcast %c127_i32_27 : i32 to vector<8x1xi32>
    %89 = arith.subi %88, %87 : vector<8x1xi32>
    %c3_i32 = arith.constant 3 : i32
    %90 = vector.broadcast %c3_i32 : i32 to vector<8x128xi32>
    %91 = arith.cmpi eq, %1, %90 : vector<8x128xi32>
    %92 = vector.shape_cast %89 : vector<8x1xi32> to vector<8x1xi32>
    %93 = vector.broadcast %92 : vector<8x1xi32> to vector<8x128xi32>
    %94 = arith.select %91, %93, %79 : vector<8x128xi1>, vector<8x128xi32>
    %cst_28 = arith.constant dense<-2147483648> : vector<8xi32>
    %95 = vector.multi_reduction <maxsi>, %85, %cst_28 [1] : vector<8x128xi32> to vector<8xi32>
    %96 = vector.shape_cast %95 : vector<8xi32> to vector<8x1xi32>
    %97 = vector.broadcast %96 : vector<8x1xi32> to vector<8x128xi32>
    %98 = arith.cmpi eq, %85, %97 : vector<8x128xi32>
    %c-2147483648_i32_29 = arith.constant -2147483648 : i32
    %99 = vector.broadcast %c-2147483648_i32_29 : i32 to vector<8x128xi32>
    %100 = arith.select %98, %99, %85 : vector<8x128xi1>, vector<8x128xi32>
    %c127_i32_30 = arith.constant 127 : i32
    %101 = vector.broadcast %c127_i32_30 : i32 to vector<8x1xi32>
    %102 = arith.andi %96, %101 : vector<8x1xi32>
    %c127_i32_31 = arith.constant 127 : i32
    %103 = vector.broadcast %c127_i32_31 : i32 to vector<8x1xi32>
    %104 = arith.subi %103, %102 : vector<8x1xi32>
    %c4_i32 = arith.constant 4 : i32
    %105 = vector.broadcast %c4_i32 : i32 to vector<8x128xi32>
    %106 = arith.cmpi eq, %1, %105 : vector<8x128xi32>
    %107 = vector.shape_cast %104 : vector<8x1xi32> to vector<8x1xi32>
    %108 = vector.broadcast %107 : vector<8x1xi32> to vector<8x128xi32>
    %109 = arith.select %106, %108, %94 : vector<8x128xi1>, vector<8x128xi32>
    %cst_32 = arith.constant dense<-2147483648> : vector<8xi32>
    %110 = vector.multi_reduction <maxsi>, %100, %cst_32 [1] : vector<8x128xi32> to vector<8xi32>
    %111 = vector.shape_cast %110 : vector<8xi32> to vector<8x1xi32>
    %112 = vector.broadcast %111 : vector<8x1xi32> to vector<8x128xi32>
    %113 = arith.cmpi eq, %100, %112 : vector<8x128xi32>
    %c-2147483648_i32_33 = arith.constant -2147483648 : i32
    %114 = vector.broadcast %c-2147483648_i32_33 : i32 to vector<8x128xi32>
    %115 = arith.select %113, %114, %100 : vector<8x128xi1>, vector<8x128xi32>
    %c127_i32_34 = arith.constant 127 : i32
    %116 = vector.broadcast %c127_i32_34 : i32 to vector<8x1xi32>
    %117 = arith.andi %111, %116 : vector<8x1xi32>
    %c127_i32_35 = arith.constant 127 : i32
    %118 = vector.broadcast %c127_i32_35 : i32 to vector<8x1xi32>
    %119 = arith.subi %118, %117 : vector<8x1xi32>
    %c5_i32 = arith.constant 5 : i32
    %120 = vector.broadcast %c5_i32 : i32 to vector<8x128xi32>
    %121 = arith.cmpi eq, %1, %120 : vector<8x128xi32>
    %122 = vector.shape_cast %119 : vector<8x1xi32> to vector<8x1xi32>
    %123 = vector.broadcast %122 : vector<8x1xi32> to vector<8x128xi32>
    %124 = arith.select %121, %123, %109 : vector<8x128xi1>, vector<8x128xi32>
    %cst_36 = arith.constant dense<-2147483648> : vector<8xi32>
    %125 = vector.multi_reduction <maxsi>, %115, %cst_36 [1] : vector<8x128xi32> to vector<8xi32>
    %126 = vector.shape_cast %125 : vector<8xi32> to vector<8x1xi32>
    %127 = vector.broadcast %126 : vector<8x1xi32> to vector<8x128xi32>
    %128 = arith.cmpi eq, %115, %127 : vector<8x128xi32>
    %c-2147483648_i32_37 = arith.constant -2147483648 : i32
    %129 = vector.broadcast %c-2147483648_i32_37 : i32 to vector<8x128xi32>
    %130 = arith.select %128, %129, %115 : vector<8x128xi1>, vector<8x128xi32>
    %c127_i32_38 = arith.constant 127 : i32
    %131 = vector.broadcast %c127_i32_38 : i32 to vector<8x1xi32>
    %132 = arith.andi %126, %131 : vector<8x1xi32>
    %c127_i32_39 = arith.constant 127 : i32
    %133 = vector.broadcast %c127_i32_39 : i32 to vector<8x1xi32>
    %134 = arith.subi %133, %132 : vector<8x1xi32>
    %c6_i32 = arith.constant 6 : i32
    %135 = vector.broadcast %c6_i32 : i32 to vector<8x128xi32>
    %136 = arith.cmpi eq, %1, %135 : vector<8x128xi32>
    %137 = vector.shape_cast %134 : vector<8x1xi32> to vector<8x1xi32>
    %138 = vector.broadcast %137 : vector<8x1xi32> to vector<8x128xi32>
    %139 = arith.select %136, %138, %124 : vector<8x128xi1>, vector<8x128xi32>
    %cst_40 = arith.constant dense<-2147483648> : vector<8xi32>
    %140 = vector.multi_reduction <maxsi>, %130, %cst_40 [1] : vector<8x128xi32> to vector<8xi32>
    %141 = vector.shape_cast %140 : vector<8xi32> to vector<8x1xi32>
    %142 = vector.broadcast %141 : vector<8x1xi32> to vector<8x128xi32>
    %143 = arith.cmpi eq, %130, %142 : vector<8x128xi32>
    %c-2147483648_i32_41 = arith.constant -2147483648 : i32
    %144 = vector.broadcast %c-2147483648_i32_41 : i32 to vector<8x128xi32>
    %145 = arith.select %143, %144, %130 : vector<8x128xi1>, vector<8x128xi32>
    %c127_i32_42 = arith.constant 127 : i32
    %146 = vector.broadcast %c127_i32_42 : i32 to vector<8x1xi32>
    %147 = arith.andi %141, %146 : vector<8x1xi32>
    %c127_i32_43 = arith.constant 127 : i32
    %148 = vector.broadcast %c127_i32_43 : i32 to vector<8x1xi32>
    %149 = arith.subi %148, %147 : vector<8x1xi32>
    %c7_i32 = arith.constant 7 : i32
    %150 = vector.broadcast %c7_i32 : i32 to vector<8x128xi32>
    %151 = arith.cmpi eq, %1, %150 : vector<8x128xi32>
    %152 = vector.shape_cast %149 : vector<8x1xi32> to vector<8x1xi32>
    %153 = vector.broadcast %152 : vector<8x1xi32> to vector<8x128xi32>
    %154 = arith.select %151, %153, %139 : vector<8x128xi1>, vector<8x128xi32>
    %cst_44 = arith.constant dense<-2147483648> : vector<8xi32>
    %155 = vector.multi_reduction <maxsi>, %145, %cst_44 [1] : vector<8x128xi32> to vector<8xi32>
    %156 = vector.shape_cast %155 : vector<8xi32> to vector<8x1xi32>
    %157 = vector.broadcast %156 : vector<8x1xi32> to vector<8x128xi32>
    %158 = arith.cmpi eq, %145, %157 : vector<8x128xi32>
    %c-2147483648_i32_45 = arith.constant -2147483648 : i32
    %159 = vector.broadcast %c-2147483648_i32_45 : i32 to vector<8x128xi32>
    %160 = arith.select %158, %159, %145 : vector<8x128xi1>, vector<8x128xi32>
    %c127_i32_46 = arith.constant 127 : i32
    %161 = vector.broadcast %c127_i32_46 : i32 to vector<8x1xi32>
    %162 = arith.andi %156, %161 : vector<8x1xi32>
    %c127_i32_47 = arith.constant 127 : i32
    %163 = vector.broadcast %c127_i32_47 : i32 to vector<8x1xi32>
    %164 = arith.subi %163, %162 : vector<8x1xi32>
    %c8_i32 = arith.constant 8 : i32
    %165 = vector.broadcast %c8_i32 : i32 to vector<8x128xi32>
    %166 = arith.cmpi eq, %1, %165 : vector<8x128xi32>
    %167 = vector.shape_cast %164 : vector<8x1xi32> to vector<8x1xi32>
    %168 = vector.broadcast %167 : vector<8x1xi32> to vector<8x128xi32>
    %169 = arith.select %166, %168, %154 : vector<8x128xi1>, vector<8x128xi32>
    %cst_48 = arith.constant dense<-2147483648> : vector<8xi32>
    %170 = vector.multi_reduction <maxsi>, %160, %cst_48 [1] : vector<8x128xi32> to vector<8xi32>
    %171 = vector.shape_cast %170 : vector<8xi32> to vector<8x1xi32>
    %c127_i32_49 = arith.constant 127 : i32
    %172 = vector.broadcast %c127_i32_49 : i32 to vector<8x1xi32>
    %173 = arith.andi %171, %172 : vector<8x1xi32>
    %c127_i32_50 = arith.constant 127 : i32
    %174 = vector.broadcast %c127_i32_50 : i32 to vector<8x1xi32>
    %175 = arith.subi %174, %173 : vector<8x1xi32>
    %c9_i32 = arith.constant 9 : i32
    %176 = vector.broadcast %c9_i32 : i32 to vector<8x128xi32>
    %177 = arith.cmpi eq, %1, %176 : vector<8x128xi32>
    %178 = vector.shape_cast %175 : vector<8x1xi32> to vector<8x1xi32>
    %179 = vector.broadcast %178 : vector<8x1xi32> to vector<8x128xi32>
    %180 = arith.select %177, %179, %169 : vector<8x128xi1>, vector<8x128xi32>
    %c0_i32_51 = arith.constant 0 : i32
    %181 = vector.broadcast %c0_i32_51 : i32 to vector<8x1xi32>
    %182 = arith.cmpi sgt, %11, %181 : vector<8x1xi32>
    %c0_i32_52 = arith.constant 0 : i32
    %183 = vector.shape_cast %182 : vector<8x1xi1> to vector<8x1xi1>
    %184 = vector.broadcast %183 : vector<8x1xi1> to vector<8x128xi1>
    %185 = vector.broadcast %c0_i32_52 : i32 to vector<8x128xi32>
    %186 = arith.select %184, %180, %185 : vector<8x128xi1>, vector<8x128xi32>
    %c10_i32 = arith.constant 10 : i32
    %187 = vector.broadcast %c10_i32 : i32 to vector<8x128xi32>
    %188 = arith.cmpi eq, %1, %187 : vector<8x128xi32>
    %189 = vector.shape_cast %11 : vector<8x1xi32> to vector<8x1xi32>
    %190 = vector.broadcast %189 : vector<8x1xi32> to vector<8x128xi32>
    %191 = arith.select %188, %190, %186 : vector<8x128xi1>, vector<8x128xi32>
    %c0_53 = arith.constant 0 : index
    %c0_54 = arith.constant 0 : index
    %192 = vector.load %arg5[%c0_53, %c0_54] : memref<8x128xi32, #tpu.memory_space<vmem>>, vector<8x128xi32>
    tpu.vector_store %arg5[%c0_53, %c0_54], %191 {strides = array<i32>} : memref<8x128xi32, #tpu.memory_space<vmem>>, vector<8x128xi32>,
    return
  }
  func.func @transform_0(%arg0: i32) -> (i32, i32) {
    %c0_i32 = arith.constant 0 : i32
    %c0_i32_0 = arith.constant 0 : i32
    return %arg0, %c0_i32 : i32, i32
  }
  func.func @transform_1(%arg0: i32) -> (i32, i32) {
    %c0_i32 = arith.constant 0 : i32
    %c0_i32_0 = arith.constant 0 : i32
    %c0_i32_1 = arith.constant 0 : i32
    return %c0_i32, %c0_i32_0 : i32, i32
  }
  func.func @transform_2(%arg0: i32) -> (i32, i32) {
    %c0_i32 = arith.constant 0 : i32
    %c0_i32_0 = arith.constant 0 : i32
    %c0_i32_1 = arith.constant 0 : i32
    return %c0_i32, %c0_i32_0 : i32, i32
  }
  func.func @transform_3(%arg0: i32) -> (i32, i32) {
    %c0_i32 = arith.constant 0 : i32
    %c0_i32_0 = arith.constant 0 : i32
    %c0_i32_1 = arith.constant 0 : i32
    return %c0_i32, %c0_i32_0 : i32, i32
  }
  func.func @transform_4(%arg0: i32) -> (i32, i32) {
    %c0_i32 = arith.constant 0 : i32
    %c0_i32_0 = arith.constant 0 : i32
    return %arg0, %c0_i32 : i32, i32
  }
}

</mosaic_0001>

<llo_original>
// kernel: hard_masked_forward.1
$region0: #{hard_masked_forward.1}
  #allocation0 [shape = 'u32[]', space=smem, size = 0x4, offset = 0x4, fixed_abs, tag = 'smem constant byte address 0x4 - core index']
  #allocation1 [shape = 'u32[144,128]{1,0:T(1,128)}', space=vmem, size = 0x12000, scoped, tag = 'internal scratch']
  %s0 = inlined_call_operand.vmem [shape: s32[8,1], index: 0, kind: input, shape index: {}]
  %s1 = inlined_call_operand.vmem [shape: f32[128,34], index: 1, kind: input, shape index: {}]
  %s2 = inlined_call_operand.vmem [shape: f32[1,33], index: 2, kind: input, shape index: {}]
  %s3 = inlined_call_operand.vmem [shape: f32[33,128], index: 3, kind: input, shape index: {}]
  %s4 = inlined_call_operand.vmem [shape: s32[8,128], index: 4, kind: output, shape index: {}]
  %s5 = sld [smem:[#allocation0]]
  $region26: #{hard_masked_forward.1} parent=0
    _
  %s7 = ssub.s32 1, %s5
  %s8 = scalar_select 0, %s7, %s5
  // Predicated region
  $region2: #{hard_masked_forward.1} parent=0 // pred_check
    _
  $region3: #{hard_masked_forward.1} parent=0 // pred_check_branch
    %10 = sbr.rel (0) target = $region5
  $region4: #{hard_masked_forward.1} parent=0 // pred_region
    _
  $region5: #{hard_masked_forward.1} parent=0 // pred_fallthru
    _
  // Predicated region
  $region6: #{hard_masked_forward.1} parent=0 // pred_check
    _
  $region7: #{hard_masked_forward.1} parent=0 // pred_check_branch
    %12 = sbr.rel (0) target = $region9
  $region8: #{hard_masked_forward.1} parent=0 // pred_region
    _
  $region9: #{hard_masked_forward.1} parent=0 // pred_fallthru
    _
  // Predicated region
  $region10: #{hard_masked_forward.1} parent=0 // pred_check
    _
  $region11: #{hard_masked_forward.1} parent=0 // pred_check_branch
    %14 = sbr.rel (0) target = $region13
  $region12: #{hard_masked_forward.1} parent=0 // pred_region
    _
  $region13: #{hard_masked_forward.1} parent=0 // pred_fallthru
    _
  // Predicated region
  $region14: #{hard_masked_forward.1} parent=0 // pred_check
    _
  $region15: #{hard_masked_forward.1} parent=0 // pred_check_branch
    %16 = sbr.rel (0) target = $region17
  $region16: #{hard_masked_forward.1} parent=0 // pred_region
    _
  $region17: #{hard_masked_forward.1} parent=0 // pred_fallthru
    _
  %v17 = vld [vmem:[%s0] sm:$0xff]
  %v18 = vlaneseq
  %v19 = vand.u32 %v18, 127
  %20 = vset.pattern.permute.xlu0 0
  %21 = vperm.xlu0 %20, %v17
  %v22 = vpop.permute.xlu0 %21
  %vm23 = vcmp.eq.s32.totalorder %v22, %v19
  %v24 = vsel %vm23, 1, 0
  %v25 = vcvt.s32.f32 %v24
  %v26 = vld [vmem:[%s1] sm:$0xff]
  %v27 = vld [vmem:[%s1 + $0x8] sm:$0xff]
  %v28 = vld [vmem:[%s1 + $0x10] sm:$0xff]
  %v29 = vld [vmem:[%s1 + $0x18] sm:$0xff]
  %v30 = vld [vmem:[%s1 + $0x20] sm:$0xff]
  %v31 = vld [vmem:[%s1 + $0x28] sm:$0xff]
  %v32 = vld [vmem:[%s1 + $0x30] sm:$0xff]
  %v33 = vld [vmem:[%s1 + $0x38] sm:$0xff]
  %v34 = vld [vmem:[%s1 + $0x40] sm:$0xff]
  %v35 = vld [vmem:[%s1 + $0x48] sm:$0xff]
  %v36 = vld [vmem:[%s1 + $0x50] sm:$0xff]
  %v37 = vld [vmem:[%s1 + $0x58] sm:$0xff]
  %v38 = vld [vmem:[%s1 + $0x60] sm:$0xff]
  %v39 = vld [vmem:[%s1 + $0x68] sm:$0xff]
  %v40 = vld [vmem:[%s1 + $0x70] sm:$0xff]
  %v41 = vld [vmem:[%s1 + $0x78] sm:$0xff]
  %42 = vmatprep.subr.mxu0 0.0
  %43 = vmatpush1.msra.mxu0 %v26
  %44 = vmatprep.subr.mxu0 0.0
  %45 = vmatpush1.msra.mxu0 %v27
  %46 = vmatprep.subr.mxu0 0.0
  %47 = vmatpush1.msra.mxu0 %v28
  %48 = vmatprep.subr.mxu0 0.0
  %49 = vmatpush1.msra.mxu0 %v29
  %50 = vmatprep.subr.mxu0 0.0
  %51 = vmatpush1.msra.mxu0 %v30
  %52 = vmatprep.subr.mxu0 0.0
  %53 = vmatpush1.msra.mxu0 %v31
  %54 = vmatprep.subr.mxu0 0.0
  %55 = vmatpush1.msra.mxu0 %v32
  %56 = vmatprep.subr.mxu0 0.0
  %57 = vmatpush1.msra.mxu0 %v33
  %58 = vmatprep.subr.mxu0 0.0
  %59 = vmatpush1.msra.mxu0 %v34
  %60 = vmatprep.subr.mxu0 0.0
  %61 = vmatpush1.msra.mxu0 %v35
  %62 = vmatprep.subr.mxu0 0.0
  %63 = vmatpush1.msra.mxu0 %v36
  %64 = vmatprep.subr.mxu0 0.0
  %65 = vmatpush1.msra.mxu0 %v37
  %66 = vmatprep.subr.mxu0 0.0
  %67 = vmatpush1.msra.mxu0 %v38
  %68 = vmatprep.subr.mxu0 0.0
  %69 = vmatpush1.msra.mxu0 %v39
  %70 = vmatprep.subr.mxu0 0.0
  %71 = vmatpush1.msra.mxu0 %v40
  %72 = vmatprep.subr.mxu0 0.0
  %73 = vmatpush1.msra.mxu0 %v41
  %74 = vmatprep.subr.mxu0 0.0
  %75 = vmatpush1.msra.mxu0 0.0
  %76 = vmatprep.subr.mxu0 0.0
  %77 = vmatpush1.msra.mxu0 0.0
  %78 = vmatprep.subr.mxu0 0.0
  %79 = vmatpush1.msra.mxu0 0.0
  %80 = vmatprep.subr.mxu0 0.0
  %81 = vmatpush1.msra.mxu0 0.0
  %82 = vmatprep.subr.mxu0 0.0
  %83 = vmatpush1.msra.mxu0 0.0
  %84 = vmatprep.subr.mxu0 0.0
  %85 = vmatpush1.msra.mxu0 0.0
  %86 = vmatprep.subr.mxu0 0.0
  %87 = vmatpush1.msra.mxu0 0.0
  %88 = vmatprep.subr.mxu0 0.0
  %89 = vmatpush1.msra.mxu0 0.0
  %90 = vmatprep.subr.mxu0 0.0
  %91 = vmatpush1.msra.mxu0 0.0
  %92 = vmatprep.subr.mxu0 0.0
  %93 = vmatpush1.msra.mxu0 0.0
  %94 = vmatprep.subr.mxu0 0.0
  %95 = vmatpush1.msra.mxu0 0.0
  %96 = vmatprep.subr.mxu0 0.0
  %97 = vmatpush1.msra.mxu0 0.0
  %98 = vmatprep.subr.mxu0 0.0
  %99 = vmatpush1.msra.mxu0 0.0
  %100 = vmatprep.subr.mxu0 0.0
  %101 = vmatpush1.msra.mxu0 0.0
  %102 = vmatprep.subr.mxu0 0.0
  %103 = vmatpush1.msra.mxu0 0.0
  %104 = vmatprep.subr.mxu0 0.0
  %105 = vmatpush1.msra.mxu0 0.0
  %106 = vmatprep.mubr.f32.mxu0 0.0
  %107 = vmatmul.mubr.f32.gmra.mrb[0].mxu0 %v25
  %v108 = vpop.f32.mrb[0].mxu0
  %v109 = vadd.f32 0.0, %v108
  %v110 = vpop.f32.mrb[0].mxu0
  %111 = vdwg.mxu0
  %vm112 = vcmp.gt.f32.partialorder %v109, 0.0
  %v113 = vsel %vm112, 1, 0
  %vm114 = vcmp.eq.s32.totalorder %v113, 1
  %v115 = vld [vmem:[%s2] sm:$0x1]
  %v116 = vsel %vm114, 1, 0
  %117 = vset.pattern.permute.xlu0 33
  %118 = vperm.xlu0 %117, %v116
  %v119 = vpop.permute.xlu0 %118
  %vm120 = vcmp.eq.s32.totalorder %v119, 1
  %v122 = vlaneseq
  %v123 = vshrl.u32 %v122, 7
  %v124 = vsub.s32 0, %v123
  %v125 = vrot.slane %v115, %v124
  %v127 = vsel %vm120, %v125, %v109
  %v128 = vld [vmem:[%s3] sm:$0xff]
  %v129 = vld [vmem:[%s3 + $0x8] sm:$0xff]
  %v130 = vld [vmem:[%s3 + $0x10] sm:$0xff]
  %v131 = vld [vmem:[%s3 + $0x18] sm:$0xff]
  %v132 = vld [vmem:[%s3 + $0x20] sm:$0x1]
  %vm133 = vcmask 269312
  %v135 = vsel %vm133, %v127, 0
  %vm137 = vcmask 1040384
  %v139 = vsel %vm137, %v132, 0
  %141 = vmatprep.subr.mxu0 0.0
  %142 = vmatpush1.msra.mxu0 %v128
  %143 = vmatprep.subr.mxu0 0.0
  %144 = vmatpush1.msra.mxu0 %v129
  %145 = vmatprep.subr.mxu0 0.0
  %146 = vmatpush1.msra.mxu0 %v130
  %147 = vmatprep.subr.mxu0 0.0
  %148 = vmatpush1.msra.mxu0 %v131
  %149 = vmatprep.subr.mxu0 0.0
  %150 = vmatpush1.msra.mxu0 %v139
  %151 = vmatprep.subr.mxu0 0.0
  %152 = vmatpush1.msra.mxu0 0.0
  %153 = vmatprep.subr.mxu0 0.0
  %154 = vmatpush1.msra.mxu0 0.0
  %155 = vmatprep.subr.mxu0 0.0
  %156 = vmatpush1.msra.mxu0 0.0
  %157 = vmatprep.subr.mxu0 0.0
  %158 = vmatpush1.msra.mxu0 0.0
  %159 = vmatprep.subr.mxu0 0.0
  %160 = vmatpush1.msra.mxu0 0.0
  %161 = vmatprep.subr.mxu0 0.0
  %162 = vmatpush1.msra.mxu0 0.0
  %163 = vmatprep.subr.mxu0 0.0
  %164 = vmatpush1.msra.mxu0 0.0
  %165 = vmatprep.subr.mxu0 0.0
  %166 = vmatpush1.msra.mxu0 0.0
  %167 = vmatprep.subr.mxu0 0.0
  %168 = vmatpush1.msra.mxu0 0.0
  %169 = vmatprep.subr.mxu0 0.0
  %170 = vmatpush1.msra.mxu0 0.0
  %171 = vmatprep.subr.mxu0 0.0
  %172 = vmatpush1.msra.mxu0 0.0
  %173 = vmatprep.subr.mxu0 0.0
  %174 = vmatpush1.msra.mxu0 0.0
  %175 = vmatprep.subr.mxu0 0.0
  %176 = vmatpush1.msra.mxu0 0.0
  %177 = vmatprep.subr.mxu0 0.0
  %178 = vmatpush1.msra.mxu0 0.0
  %179 = vmatprep.subr.mxu0 0.0
  %180 = vmatpush1.msra.mxu0 0.0
  %181 = vmatprep.subr.mxu0 0.0
  %182 = vmatpush1.msra.mxu0 0.0
  %183 = vmatprep.subr.mxu0 0.0
  %184 = vmatpush1.msra.mxu0 0.0
  %185 = vmatprep.subr.mxu0 0.0
  %186 = vmatpush1.msra.mxu0 0.0
  %187 = vmatprep.subr.mxu0 0.0
  %188 = vmatpush1.msra.mxu0 0.0
  %189 = vmatprep.subr.mxu0 0.0
  %190 = vmatpush1.msra.mxu0 0.0
  %191 = vmatprep.subr.mxu0 0.0
  %192 = vmatpush1.msra.mxu0 0.0
  %193 = vmatprep.subr.mxu0 0.0
  %194 = vmatpush1.msra.mxu0 0.0
  %195 = vmatprep.subr.mxu0 0.0
  %196 = vmatpush1.msra.mxu0 0.0
  %197 = vmatprep.subr.mxu0 0.0
  %198 = vmatpush1.msra.mxu0 0.0
  %199 = vmatprep.subr.mxu0 0.0
  %200 = vmatpush1.msra.mxu0 0.0
  %201 = vmatprep.subr.mxu0 0.0
  %202 = vmatpush1.msra.mxu0 0.0
  %203 = vmatprep.subr.mxu0 0.0
  %204 = vmatpush1.msra.mxu0 0.0
  %205 = vmatprep.mubr.f32.mxu0 0.0
  %206 = vmatmul.mubr.f32.gmra.mrb[0].mxu0 %v135
  %v207 = vpop.f32.mrb[0].mxu0
  %v208 = vadd.f32 0.0, %v207
  %v209 = vpop.f32.mrb[0].mxu0
  %210 = vdwg.mxu0
  %vm212 = vcmp.ge.s32.totalorder %v208, 0
  %v213 = vsub.s32 2147483648, %v208
  %v214 = vsel %vm212, %v208, %v213
  %v215 = vand.u32 %v214, 4294967168
  %v216 = vsub.s32 127, %v19
  %v217 = vor.u32 %v215, %v216
  %v218 = vand.u32 %v217, 65535
  %v219 = vshra.s32 %v217, 16
  %v220 = vcvt.s32.f32 %v218
  %v221 = vcvt.s32.f32 %v219
  %222 = vmax.xlane.f32.xlu0 %v221
  %v223 = vpop.xlane.xlu0 %222
  %vm224 = vcmp.eq.f32.partialorder %v221, %v223
  %v225 = vsel %vm224, %v220, -inf
  %226 = vmax.xlane.f32.xlu0 %v225
  %v227 = vpop.xlane.xlu0 %226
  %v228 = vcvt.f32.s32 %v227
  %v229 = vcvt.f32.s32 %v223
  %v230 = vshll.u32 %v229, 16
  %v231 = vadd.s32 %v230, %v228
  %vm232 = vcmp.eq.s32.totalorder %v217, %v231
  %v233 = vsel %vm232, 2147483648, %v217
  %v234 = vand.u32 %v231, 127
  %v235 = vsub.s32 127, %v234
  %vm236 = vcmp.eq.s32.totalorder %v19, 0
  %v237 = vsel %vm236, %v235, 0
  %v238 = vand.u32 %v233, 65535
  %v239 = vshra.s32 %v233, 16
  %v240 = vcvt.s32.f32 %v238
  %v241 = vcvt.s32.f32 %v239
  %242 = vmax.xlane.f32.xlu0 %v241
  %v243 = vpop.xlane.xlu0 %242
  %vm244 = vcmp.eq.f32.partialorder %v241, %v243
  %v245 = vsel %vm244, %v240, -inf
  %246 = vmax.xlane.f32.xlu0 %v245
  %v247 = vpop.xlane.xlu0 %246
  %v248 = vcvt.f32.s32 %v247
  %v249 = vcvt.f32.s32 %v243
  %v250 = vshll.u32 %v249, 16
  %v251 = vadd.s32 %v250, %v248
  %vm252 = vcmp.eq.s32.totalorder %v233, %v251
  %v253 = vsel %vm252, 2147483648, %v233
  %v254 = vand.u32 %v251, 127
  %v255 = vsub.s32 127, %v254
  %vm256 = vcmp.eq.s32.totalorder %v19, 1
  %v257 = vsel %vm256, %v255, %v237
  %v258 = vand.u32 %v253, 65535
  %v259 = vshra.s32 %v253, 16
  %v260 = vcvt.s32.f32 %v258
  %v261 = vcvt.s32.f32 %v259
  %262 = vmax.xlane.f32.xlu0 %v261
  %v263 = vpop.xlane.xlu0 %262
  %vm264 = vcmp.eq.f32.partialorder %v261, %v263
  %v265 = vsel %vm264, %v260, -inf
  %266 = vmax.xlane.f32.xlu0 %v265
  %v267 = vpop.xlane.xlu0 %266
  %v268 = vcvt.f32.s32 %v267
  %v269 = vcvt.f32.s32 %v263
  %v270 = vshll.u32 %v269, 16
  %v271 = vadd.s32 %v270, %v268
  %vm272 = vcmp.eq.s32.totalorder %v253, %v271
  %v273 = vsel %vm272, 2147483648, %v253
  %v274 = vand.u32 %v271, 127
  %v275 = vsub.s32 127, %v274
  %vm276 = vcmp.eq.s32.totalorder %v19, 2
  %v277 = vsel %vm276, %v275, %v257
  %v278 = vand.u32 %v273, 65535
  %v279 = vshra.s32 %v273, 16
  %v280 = vcvt.s32.f32 %v278
  %v281 = vcvt.s32.f32 %v279
  %282 = vmax.xlane.f32.xlu0 %v281
  %v283 = vpop.xlane.xlu0 %282
  %vm284 = vcmp.eq.f32.partialorder %v281, %v283
  %v285 = vsel %vm284, %v280, -inf
  %286 = vmax.xlane.f32.xlu0 %v285
  %v287 = vpop.xlane.xlu0 %286
  %v288 = vcvt.f32.s32 %v287
  %v289 = vcvt.f32.s32 %v283
  %v290 = vshll.u32 %v289, 16
  %v291 = vadd.s32 %v290, %v288
  %vm292 = vcmp.eq.s32.totalorder %v273, %v291
  %v293 = vsel %vm292, 2147483648, %v273
  %v294 = vand.u32 %v291, 127
  %v295 = vsub.s32 127, %v294
  %vm296 = vcmp.eq.s32.totalorder %v19, 3
  %v297 = vsel %vm296, %v295, %v277
  %v298 = vand.u32 %v293, 65535
  %v299 = vshra.s32 %v293, 16
  %v300 = vcvt.s32.f32 %v298
  %v301 = vcvt.s32.f32 %v299
  %302 = vmax.xlane.f32.xlu0 %v301
  %v303 = vpop.xlane.xlu0 %302
  %vm304 = vcmp.eq.f32.partialorder %v301, %v303
  %v305 = vsel %vm304, %v300, -inf
  %306 = vmax.xlane.f32.xlu0 %v305
  %v307 = vpop.xlane.xlu0 %306
  %v308 = vcvt.f32.s32 %v307
  %v309 = vcvt.f32.s32 %v303
  %v310 = vshll.u32 %v309, 16
  %v311 = vadd.s32 %v310, %v308
  %vm312 = vcmp.eq.s32.totalorder %v293, %v311
  %v313 = vsel %vm312, 2147483648, %v293
  %v314 = vand.u32 %v311, 127
  %v315 = vsub.s32 127, %v314
  %vm316 = vcmp.eq.s32.totalorder %v19, 4
  %v317 = vsel %vm316, %v315, %v297
  %v318 = vand.u32 %v313, 65535
  %v319 = vshra.s32 %v313, 16
  %v320 = vcvt.s32.f32 %v318
  %v321 = vcvt.s32.f32 %v319
  %322 = vmax.xlane.f32.xlu0 %v321
  %v323 = vpop.xlane.xlu0 %322
  %vm324 = vcmp.eq.f32.partialorder %v321, %v323
  %v325 = vsel %vm324, %v320, -inf
  %326 = vmax.xlane.f32.xlu0 %v325
  %v327 = vpop.xlane.xlu0 %326
  %v328 = vcvt.f32.s32 %v327
  %v329 = vcvt.f32.s32 %v323
  %v330 = vshll.u32 %v329, 16
  %v331 = vadd.s32 %v330, %v328
  %vm332 = vcmp.eq.s32.totalorder %v313, %v331
  %v333 = vsel %vm332, 2147483648, %v313
  %v334 = vand.u32 %v331, 127
  %v335 = vsub.s32 127, %v334
  %vm336 = vcmp.eq.s32.totalorder %v19, 5
  %v337 = vsel %vm336, %v335, %v317
  %v338 = vand.u32 %v333, 65535
  %v339 = vshra.s32 %v333, 16
  %v340 = vcvt.s32.f32 %v338
  %v341 = vcvt.s32.f32 %v339
  %342 = vmax.xlane.f32.xlu0 %v341
  %v343 = vpop.xlane.xlu0 %342
  %vm344 = vcmp.eq.f32.partialorder %v341, %v343
  %v345 = vsel %vm344, %v340, -inf
  %346 = vmax.xlane.f32.xlu0 %v345
  %v347 = vpop.xlane.xlu0 %346
  %v348 = vcvt.f32.s32 %v347
  %v349 = vcvt.f32.s32 %v343
  %v350 = vshll.u32 %v349, 16
  %v351 = vadd.s32 %v350, %v348
  %vm352 = vcmp.eq.s32.totalorder %v333, %v351
  %v353 = vsel %vm352, 2147483648, %v333
  %v354 = vand.u32 %v351, 127
  %v355 = vsub.s32 127, %v354
  %vm356 = vcmp.eq.s32.totalorder %v19, 6
  %v357 = vsel %vm356, %v355, %v337
  %v358 = vand.u32 %v353, 65535
  %v359 = vshra.s32 %v353, 16
  %v360 = vcvt.s32.f32 %v358
  %v361 = vcvt.s32.f32 %v359
  %362 = vmax.xlane.f32.xlu0 %v361
  %v363 = vpop.xlane.xlu0 %362
  %vm364 = vcmp.eq.f32.partialorder %v361, %v363
  %v365 = vsel %vm364, %v360, -inf
  %366 = vmax.xlane.f32.xlu0 %v365
  %v367 = vpop.xlane.xlu0 %366
  %v368 = vcvt.f32.s32 %v367
  %v369 = vcvt.f32.s32 %v363
  %v370 = vshll.u32 %v369, 16
  %v371 = vadd.s32 %v370, %v368
  %vm372 = vcmp.eq.s32.totalorder %v353, %v371
  %v373 = vsel %vm372, 2147483648, %v353
  %v374 = vand.u32 %v371, 127
  %v375 = vsub.s32 127, %v374
  %vm376 = vcmp.eq.s32.totalorder %v19, 7
  %v377 = vsel %vm376, %v375, %v357
  %v378 = vand.u32 %v373, 65535
  %v379 = vshra.s32 %v373, 16
  %v380 = vcvt.s32.f32 %v378
  %v381 = vcvt.s32.f32 %v379
  %382 = vmax.xlane.f32.xlu0 %v381
  %v383 = vpop.xlane.xlu0 %382
  %vm384 = vcmp.eq.f32.partialorder %v381, %v383
  %v385 = vsel %vm384, %v380, -inf
  %386 = vmax.xlane.f32.xlu0 %v385
  %v387 = vpop.xlane.xlu0 %386
  %v388 = vcvt.f32.s32 %v387
  %v389 = vcvt.f32.s32 %v383
  %v390 = vshll.u32 %v389, 16
  %v391 = vadd.s32 %v390, %v388
  %vm392 = vcmp.eq.s32.totalorder %v373, %v391
  %v393 = vsel %vm392, 2147483648, %v373
  %v394 = vand.u32 %v391, 127
  %v395 = vsub.s32 127, %v394
  %vm396 = vcmp.eq.s32.totalorder %v19, 8
  %v397 = vsel %vm396, %v395, %v377
  %v398 = vand.u32 %v393, 65535
  %v399 = vshra.s32 %v393, 16
  %v400 = vcvt.s32.f32 %v398
  %v401 = vcvt.s32.f32 %v399
  %402 = vmax.xlane.f32.xlu0 %v401
  %v403 = vpop.xlane.xlu0 %402
  %vm404 = vcmp.eq.f32.partialorder %v401, %v403
  %v405 = vsel %vm404, %v400, -inf
  %406 = vmax.xlane.f32.xlu0 %v405
  %v407 = vpop.xlane.xlu0 %406
  %v408 = vcvt.f32.s32 %v407
  %v409 = vcvt.f32.s32 %v403
  %v410 = vshll.u32 %v409, 16
  %v411 = vadd.s32 %v410, %v408
  %v412 = vand.u32 %v411, 127
  %v413 = vsub.s32 127, %v412
  %vm414 = vcmp.eq.s32.totalorder %v19, 9
  %v415 = vsel %vm414, %v413, %v397
  %vm416 = vcmp.gt.s32.totalorder %v113, 0
  %v417 = vsel %vm416, 1, 0
  %418 = vset.pattern.permute.xlu0 33
  %419 = vperm.xlu0 %418, %v417
  %v420 = vpop.permute.xlu0 %419
  %vm421 = vcmp.eq.s32.totalorder %v420, 1
  %v422 = vsel %vm421, %v415, 0
  %vm423 = vcmp.eq.s32.totalorder %v19, 10
  %424 = vset.pattern.permute.xlu0 33
  %425 = vperm.xlu0 %424, %v113
  %v426 = vpop.permute.xlu0 %425
  %v427 = vsel %vm423, %v426, %v422
  %428 = vst [vmem:[%s4] sm:$0xff] %v427
  // Predicated region
  $region18: #{hard_masked_forward.1} parent=0 // pred_check
    _
  $region19: #{hard_masked_forward.1} parent=0 // pred_check_branch
    %430 = sbr.rel (0) target = $region21
  $region20: #{hard_masked_forward.1} parent=0 // pred_region
    _
  $region21: #{hard_masked_forward.1} parent=0 // pred_fallthru
    _
  // Predicated region
  $region22: #{hard_masked_forward.1} parent=0 // pred_check
    _
  $region23: #{hard_masked_forward.1} parent=0 // pred_check_branch
    %432 = sbr.rel (0) target = $region25
  $region24: #{hard_masked_forward.1} parent=0 // pred_region
    _
  $region25: #{hard_masked_forward.1} parent=0 // pred_fallthru
    _

</llo_original>
